<compile_context>
chip_gen: v6e
topology: v6e:2x2x1
jax: 0.10.0
libtpu: 0.0.40
codegen_flags: <defaults>
</compile_context>

<pallas_src>
import jax
import jax.numpy as jnp
from jax.experimental import pallas as pl
from jax.experimental.pallas import tpu as pltpu


def _round_up(n, m):
    return (n + m - 1) // m * m


def _pick_tb(B, cap=512):
    """Largest batch tile (<= cap, multiple of 8) that keeps >= 2 grid steps."""
    b8 = _round_up(max(B, 8), 8)
    if b8 <= 16:                       # too small to split; single step
        return b8
    half = _round_up(pl.cdiv(b8, 2), 8)
    return min(cap, half)


def agent_kernel(x_ref, w1_ref, b1_ref, w2_ref, w3_ref, out_ref):
    # x: [TB, S]; w1: [S, HP]; b1: [1, HP]; w2: [HP, HP]; w3: [HP, OUT].
    # Lane 2H of b1 is 1.0 -> bias-fold carrier lane for layers 2 and 3.
    dt = w1_ref.dtype
    h = jnp.dot(x_ref[...], w1_ref[...], preferred_element_type=jnp.float32)
    h = jnp.maximum(h + b1_ref[...], 0.0)                       # [TB, HP] f32
    h = jnp.dot(h.astype(dt), w2_ref[...], preferred_element_type=jnp.float32)
    h = jnp.maximum(h, 0.0)
    out_ref[...] = jnp.dot(h.astype(dt), w3_ref[...],
                           preferred_element_type=jnp.float32)


def fuse_params(p, *, compute_dtype=jnp.float32):
    """Build the fused weights ONCE per parameter set.

    w1f: [S,  HP]  = [w1 | wa | 0]                      (HP = 2H+1 -> 128)
    b1f: [1,  HP]  = [b1 | ba | 1 | 0]                  (the "1" feeds the fold)
    w2f: [HP, HP]  = [[w2 | 0 | 0], [0 | I_H | 0], [b2 | 0 | 1], [0]]
    w3f: [HP, OUT] = [[w3 | 0 | pad], [0 | wa2 | pad], [b3 | ba2 | pad], [0]]
    """
    S, H = p["w1"].shape
    out_q = p["w3"].shape[1]
    num_agg = p["wa2"].shape[1]
    H2 = 2 * H
    HP = max(128, _round_up(H2 + 1, 128))          # padded fused hidden width

    w1f = jnp.zeros((S, HP), jnp.float32)
    w1f = w1f.at[:, :H].set(p["w1"])
    w1f = w1f.at[:, H:H2].set(p["wa"])

    b1f = jnp.zeros((1, HP), jnp.float32)
    b1f = b1f.at[0, :H].set(p["b1"].reshape(-1))
    b1f = b1f.at[0, H:H2].set(p["ba"].reshape(-1))
    b1f = b1f.at[0, H2].set(1.0)

    w2f = jnp.zeros((HP, HP), jnp.float32)
    w2f = w2f.at[:H, :H].set(p["w2"])
    w2f = w2f.at[H:H2, H:H2].set(jnp.eye(H, dtype=jnp.float32))
    w2f = w2f.at[H2, :H].set(p["b2"].reshape(-1))
    w2f = w2f.at[H2, H2].set(1.0)

    n_out = out_q + num_agg
    out_cols = max(128, _round_up(n_out, 128))     # lane-dense output width
    w3f = jnp.zeros((HP, out_cols), jnp.float32)
    w3f = w3f.at[:H, :out_q].set(p["w3"])
    w3f = w3f.at[H:H2, out_q:n_out].set(p["wa2"])
    w3f = w3f.at[H2, :out_q].set(p["b3"].reshape(-1))
    w3f = w3f.at[H2, out_q:n_out].set(p["ba2"].reshape(-1))

    return dict(w1f=w1f.astype(compute_dtype),
                w2f=w2f.astype(compute_dtype),
                w3f=w3f.astype(compute_dtype),
                b1f=b1f,                            # bias add stays f32
                out_q=out_q, num_agg=num_agg)


def agent_forward(x, fused, *, tb=None):
    """x: [B, state_size]. fused: output of fuse_params. Returns (q, agg)."""
    B, S = x.shape
    w1f, w2f, w3f, b1f = fused["w1f"], fused["w2f"], fused["w3f"], fused["b1f"]
    out_q, num_agg = fused["out_q"], fused["num_agg"]
    HP = w2f.shape[0]
    out_cols = w3f.shape[1]
    cdt = w1f.dtype

    if tb is None:
        tb = _pick_tb(B)
    tb = max(8, _round_up(min(tb, _round_up(B, 8)), 8))
    b_pad = _round_up(B, tb)

    x_pad = x.astype(cdt)
    if b_pad != B:
        x_pad = jnp.pad(x_pad, ((0, b_pad - B), (0, 0)))

    itemsize = jnp.dtype(cdt).itemsize
    cost = pl.CostEstimate(
        flops=2 * b_pad * (S * HP + HP * HP + HP * out_cols),
        transcendentals=0,
        bytes_accessed=(x_pad.size * itemsize
                        + b_pad * out_cols * 4
                        + (w1f.size + w2f.size + w3f.size) * itemsize
                        + b1f.size * 4),
    )

    out = pl.pallas_call(
        agent_kernel,
        out_shape=jax.ShapeDtypeStruct((b_pad, out_cols), jnp.float32),
        grid=(b_pad // tb,),
        in_specs=[
            pl.BlockSpec((tb, S), lambda i: (i, 0)),        # batch tile
            pl.BlockSpec(w1f.shape, lambda i: (0, 0)),      # grid-invariant,
            pl.BlockSpec(b1f.shape, lambda i: (0, 0)),      # VMEM-resident
            pl.BlockSpec(w2f.shape, lambda i: (0, 0)),
            pl.BlockSpec(w3f.shape, lambda i: (0, 0)),
        ],
        out_specs=pl.BlockSpec((tb, out_cols), lambda i: (i, 0)),
        compiler_params=pltpu.CompilerParams(
            dimension_semantics=("parallel",)),
        cost_estimate=cost,
    )(x_pad, w1f, b1f, w2f, w3f)

    q = out[:B, :out_q]
    agg = out[:B, out_q:out_q + num_agg]
    return q, agg


def init_params(key, state_size, hidden_size, num_groups_per_step, num_attr, num_agg):
    """Deterministic synthetic init; weights stored as [in, out] (pre-transposed)."""
    out_q = num_groups_per_step * num_attr
    ks = jax.random.split(key, 10)

    def lin(kw, kb, fan_in, fan_out):
        bound = 1.0 / jnp.sqrt(fan_in)
        w = jax.random.uniform(kw, (fan_in, fan_out), jnp.float32, -bound, bound)
        b = jax.random.uniform(kb, (1, fan_out), jnp.float32, -bound, bound)
        return w, b

    w1, b1 = lin(ks[0], ks[1], state_size, hidden_size)
    w2, b2 = lin(ks[2], ks[3], hidden_size, hidden_size)
    w3, b3 = lin(ks[4], ks[5], hidden_size, out_q)
    wa, ba = lin(ks[6], ks[7], state_size, hidden_size)
    wa2, ba2 = lin(ks[8], ks[9], hidden_size, num_agg)
    return dict(w1=w1, b1=b1, w2=w2, b2=b2, w3=w3, b3=b3,
                wa=wa, ba=ba, wa2=wa2, ba2=ba2)


def agent_forward_ref(x, p):
    """Unfused reference matching the original PyTorch forward."""
    h1 = jnp.maximum(x @ p["w1"] + p["b1"], 0.0)
    h2 = jnp.maximum(h1 @ p["w2"] + p["b2"], 0.0)
    q = h2 @ p["w3"] + p["b3"]
    ha = jnp.maximum(x @ p["wa"] + p["ba"], 0.0)
    agg = ha @ p["wa2"] + p["ba2"]
    return q, agg


if __name__ == "__main__":
    # Small shapes consistent with the module; batch stacks many RL env steps.
    B = 64
    state_size = 32
    hidden_size = 32
    num_groups_per_step = 4
    num_attr = 4
    num_agg = 4

    key = jax.random.PRNGKey(0)
    k_x, k_p = jax.random.split(key)
    x = jax.random.normal(k_x, (B, state_size), jnp.float32)
    params = init_params(k_p, state_size, hidden_size,
                         num_groups_per_step, num_attr, num_agg)
    # compute_dtype=jnp.bfloat16 is the recommended setting on v5e (no f32 MXU
    # path); default f32 keeps 1e-5 agreement with the f32 reference below.
    fused = fuse_params(params, compute_dtype=jnp.float32)

    q, agg = agent_forward(x, fused)          # tb auto-picked (2 parallel steps)
    jax.block_until_ready((q, agg))

    q_ref, agg_ref = agent_forward_ref(x, params)
    assert q.shape == (B, num_groups_per_step * num_attr)
    assert agg.shape == (B, num_agg)
    assert jnp.allclose(q, q_ref, atol=1e-5, rtol=1e-5)
    assert jnp.allclose(agg, agg_ref, atol=1e-5, rtol=1e-5)

    print("KERNEL_OK")
</pallas_src>

<mosaic_0001>
module attributes {stable_mosaic.version = 11 : i64} {
  func.func @agent_kernel(%arg0: i32, %arg1: memref<32x32xf32, #tpu.memory_space<vmem>>, %arg2: memref<32x128xf32, #tpu.memory_space<vmem>>, %arg3: memref<1x128xf32, #tpu.memory_space<vmem>>, %arg4: memref<128x128xf32, #tpu.memory_space<vmem>>, %arg5: memref<128x128xf32, #tpu.memory_space<vmem>>, %arg6: memref<32x128xf32, #tpu.memory_space<vmem>>) attributes {dimension_semantics = [#tpu.dimension_semantics<parallel>], iteration_bounds = array<i64: 2>, scalar_prefetch = 0 : i64, scratch_operands = 0 : i64, tpu.core_type = #tpu.core_type<tc>, window_params = [{transform_indices = @transform_0, window_bounds = array<i64: 32, 32>}, {pipeline_mode = #tpu.pipeline_mode<synchronous>, transform_indices = @transform_1, window_bounds = array<i64: 32, 128>}, {pipeline_mode = #tpu.pipeline_mode<synchronous>, transform_indices = @transform_2, window_bounds = array<i64: 1, 128>}, {pipeline_mode = #tpu.pipeline_mode<synchronous>, transform_indices = @transform_3, window_bounds = array<i64: 128, 128>}, {pipeline_mode = #tpu.pipeline_mode<synchronous>, transform_indices = @transform_4, window_bounds = array<i64: 128, 128>}, {transform_indices = @transform_5, window_bounds = array<i64: 32, 128>}]} {
    %c0 = arith.constant 0 : index
    %c0_0 = arith.constant 0 : index
    %0 = vector.load %arg1[%c0, %c0_0] : memref<32x32xf32, #tpu.memory_space<vmem>>, vector<32x32xf32>
    %c0_1 = arith.constant 0 : index
    %c0_2 = arith.constant 0 : index
    %1 = vector.load %arg2[%c0_1, %c0_2] : memref<32x128xf32, #tpu.memory_space<vmem>>, vector<32x128xf32>
    %cst = arith.constant dense<0.000000e+00> : vector<32x128xf32>
    %2 = tpu.matmul %0, %1, %cst {dimension_numbers = #tpu.dot_dimension_numbers<[1], [0], [0], [1], [0, 0, 1, 1], [], []>} : vector<32x32xf32>, vector<32x128xf32>, vector<32x128xf32> -> vector<32x128xf32>
    %c0_3 = arith.constant 0 : index
    %c0_4 = arith.constant 0 : index
    %3 = vector.load %arg3[%c0_3, %c0_4] : memref<1x128xf32, #tpu.memory_space<vmem>>, vector<1x128xf32>
    %4 = vector.broadcast %3 : vector<1x128xf32> to vector<32x128xf32>
    %5 = arith.addf %2, %4 : vector<32x128xf32>
    %cst_5 = arith.constant 0.000000e+00 : f32
    %6 = vector.broadcast %cst_5 : f32 to vector<32x128xf32>
    %7 = arith.maximumf %5, %6 : vector<32x128xf32>
    %c0_6 = arith.constant 0 : index
    %c0_7 = arith.constant 0 : index
    %8 = vector.load %arg4[%c0_6, %c0_7] : memref<128x128xf32, #tpu.memory_space<vmem>>, vector<128x128xf32>
    %cst_8 = arith.constant dense<0.000000e+00> : vector<32x128xf32>
    %9 = tpu.matmul %7, %8, %cst_8 {dimension_numbers = #tpu.dot_dimension_numbers<[1], [0], [0], [1], [0, 0, 1, 1], [], []>} : vector<32x128xf32>, vector<128x128xf32>, vector<32x128xf32> -> vector<32x128xf32>
    %cst_9 = arith.constant 0.000000e+00 : f32
    %10 = vector.broadcast %cst_9 : f32 to vector<32x128xf32>
    %11 = arith.maximumf %9, %10 : vector<32x128xf32>
    %c0_10 = arith.constant 0 : index
    %c0_11 = arith.constant 0 : index
    %12 = vector.load %arg5[%c0_10, %c0_11] : memref<128x128xf32, #tpu.memory_space<vmem>>, vector<128x128xf32>
    %cst_12 = arith.constant dense<0.000000e+00> : vector<32x128xf32>
    %13 = tpu.matmul %11, %12, %cst_12 {dimension_numbers = #tpu.dot_dimension_numbers<[1], [0], [0], [1], [0, 0, 1, 1], [], []>} : vector<32x128xf32>, vector<128x128xf32>, vector<32x128xf32> -> vector<32x128xf32>
    %c0_13 = arith.constant 0 : index
    %c0_14 = arith.constant 0 : index
    %14 = vector.load %arg6[%c0_13, %c0_14] : memref<32x128xf32, #tpu.memory_space<vmem>>, vector<32x128xf32>
    tpu.vector_store %arg6[%c0_13, %c0_14], %13 {strides = array<i32>} : memref<32x128xf32, #tpu.memory_space<vmem>>, vector<32x128xf32>,
    return
  }
  func.func @transform_0(%arg0: i32) -> (i32, i32) {
    %c0_i32 = arith.constant 0 : i32
    %c0_i32_0 = arith.constant 0 : i32
    return %arg0, %c0_i32 : i32, i32
  }
  func.func @transform_1(%arg0: i32) -> (i32, i32) {
    %c0_i32 = arith.constant 0 : i32
    %c0_i32_0 = arith.constant 0 : i32
    %c0_i32_1 = arith.constant 0 : i32
    return %c0_i32, %c0_i32_0 : i32, i32
  }
  func.func @transform_2(%arg0: i32) -> (i32, i32) {
    %c0_i32 = arith.constant 0 : i32
    %c0_i32_0 = arith.constant 0 : i32
    %c0_i32_1 = arith.constant 0 : i32
    return %c0_i32, %c0_i32_0 : i32, i32
  }
  func.func @transform_3(%arg0: i32) -> (i32, i32) {
    %c0_i32 = arith.constant 0 : i32
    %c0_i32_0 = arith.constant 0 : i32
    %c0_i32_1 = arith.constant 0 : i32
    return %c0_i32, %c0_i32_0 : i32, i32
  }
  func.func @transform_4(%arg0: i32) -> (i32, i32) {
    %c0_i32 = arith.constant 0 : i32
    %c0_i32_0 = arith.constant 0 : i32
    %c0_i32_1 = arith.constant 0 : i32
    return %c0_i32, %c0_i32_0 : i32, i32
  }
  func.func @transform_5(%arg0: i32) -> (i32, i32) {
    %c0_i32 = arith.constant 0 : i32
    %c0_i32_0 = arith.constant 0 : i32
    return %arg0, %c0_i32 : i32, i32
  }
}

</mosaic_0001>

<llo_original>
// kernel: tpu_custom_call.1
$region0: #{tpu_custom_call.1}
  #allocation0 [shape = 'u32[]', space=smem, size = 0x4, offset = 0x4, fixed_abs, tag = 'smem constant byte address 0x4 - core index']
  #allocation1 [shape = 'u32[144,128]{1,0:T(1,128)}', space=vmem, size = 0x12000, scoped, tag = 'internal scratch']
  %s0 = inlined_call_operand.vmem [shape: f32[64,32], index: 0, kind: input, shape index: {}]
  %s1 = inlined_call_operand.vmem [shape: f32[32,128], index: 1, kind: input, shape index: {}]
  %s2 = inlined_call_operand.vmem [shape: f32[1,128], index: 2, kind: input, shape index: {}]
  %s3 = inlined_call_operand.hbm [shape: f32[128,128], index: 3, kind: input, shape index: {}]
  %s4 = inlined_call_operand.hbm [shape: f32[128,128], index: 4, kind: input, shape index: {}]
  %s5 = inlined_call_operand.hbm [shape: f32[64,128], index: 5, kind: output, shape index: {}]
  %s6 = sld [smem:[#allocation0]]
  $region61: #{tpu_custom_call.1} parent=0
    _
  %s8 = ssub.s32 1, %s6
  %s9 = scalar_select 0, %s8, %s6
  $region1: #{tpu_custom_call.1} parent=0
    #allocation2 [shape = 'u8[65536]{0}', space=vmem, size = 0x10000, scoped, tag = 'input window, operand 3, single buffered']
    #allocation3 [shape = 's32[2]{0}', space=sflag, size = 0x8, scoped, tag = 'scoped memory for tpu_custom_call.1']
    #allocation4 [shape = 's32[2]{0}', space=sflag, size = 0x8, scoped, tag = 'scoped memory for tpu_custom_call.1']
    #allocation5 [shape = 'u8[65536]{0}', space=vmem, size = 0x10000, scoped, tag = 'input window, operand 4, single buffered']
    #allocation6 [shape = 's32[1]{0}', space=sflag, size = 0x4, scoped, tag = 'scoped memory for tpu_custom_call.1']
    #allocation7 [shape = 'u8[32768]{0}', space=vmem, size = 0x8000, scoped, tag = 'output window, operand 0']
    %10 = vsyncpa [#allocation3], 0
    %11 = vsyncpa [#allocation6], 0
    %12 = vsyncpa [#allocation4], 0
    %s13 = scalar_lea.sflag [#allocation4], 1
    %14 = vsyncpa %s13, 0
    loop: start=0, step=1, limit=4
    $region2: #{tpu_custom_call.1} parent=1 // loop_pre_header
      _
    $region3: #{tpu_custom_call.1} parent=1 // loop_header
      %s16 = sphi 0, %s20
      %p17 = scmp.ge.s32.totalorder %s16, 4
      %s26 = sphi 0, %s28
      %s29 = sphi 0, %s26
      %s30 = sphi 0, %s29
      %s46 = sphi 0, %s30
      %s50 = sphi 0, %s50
      %s52 = sphi 0, %s50
      %s53 = sphi 0, %s52
      %s67 = sphi 0, %s53
      %s71 = sphi 0, %s71
      %s73 = sphi 0, %s71
      %s74 = sphi 0, %s73
      %s88 = sphi 0, %s74
      %s92 = sphi 0, %s92
      %s94 = sphi 0, %s92
      %s95 = sphi 0, %s94
      %s109 = sphi 0, %s95
      %s113 = sphi 0, %s113
      %s115 = sphi 0, %s113
      %s116 = sphi 0, %s115
      %s130 = sphi 0, %s116
      %s136 = sphi 0, %s138
      %s139 = sphi 0, %s136
      %s140 = sphi 0, %s139
      %s156 = sphi 0, %s140
    $region4: #{tpu_custom_call.1} parent=1 // loop_header_branch
      %19 = sbr.rel (%p17) target = $region8
    $region5: #{tpu_custom_call.1} parent=1 // loop_body
      %s21 = ssub.s32 %s16, 1
      %s22 = ssub.s32 %s16, 2
      %s23 = sadd.s32 %s16, 1
      %s24 = ssub.s32 %s16, %s23
      %p25 = scmp.eq.s32.totalorder %s24, 0
      %s27 = sadd.s32 %s26, 1
      %s28 = scalar_select %p25, %s26, %s27
      %p31 = pneg %p25
      %p32 = scmp.eq.s32.totalorder %s16, 1
      %p33 = por %p31, %p32
      %p34 = scmp.ne.s32.totalorder %s26, %s29
      %p35 = scmp.eq.s32.totalorder %s16, 0
      %p36 = por %p34, %p35
      %p37 = scmp.ne.s32.totalorder %s26, %s29
      %p38 = scmp.eq.s32.totalorder %s21, 1
      %p39 = por %p37, %p38
      %p40 = scmp.ne.s32.totalorder %s29, %s30
      %p41 = scmp.eq.s32.totalorder %s21, 0
      %p42 = por %p40, %p41
      %p43 = scmp.ne.s32.totalorder %s29, %s30
      %p44 = scmp.eq.s32.totalorder %s22, 1
      %p45 = por %p43, %p44
      %p47 = scmp.ne.s32.totalorder %s30, %s46
      %p48 = scmp.eq.s32.totalorder %s22, 0
      %p49 = por %p47, %p48
      %s51 = sadd.s32 %s50, 1
      %p54 = scmp.eq.s32.totalorder %s16, 1
      %p55 = scmp.ne.s32.totalorder %s50, %s52
      %p56 = scmp.eq.s32.totalorder %s16, 0
      %p57 = por %p55, %p56
      %p58 = scmp.ne.s32.totalorder %s50, %s52
      %p59 = scmp.eq.s32.totalorder %s21, 1
      %p60 = por %p58, %p59
      %p61 = scmp.ne.s32.totalorder %s52, %s53
      %p62 = scmp.eq.s32.totalorder %s21, 0
      %p63 = por %p61, %p62
      %p64 = scmp.ne.s32.totalorder %s52, %s53
      %p65 = scmp.eq.s32.totalorder %s22, 1
      %p66 = por %p64, %p65
      %p68 = scmp.ne.s32.totalorder %s53, %s67
      %p69 = scmp.eq.s32.totalorder %s22, 0
      %p70 = por %p68, %p69
      %s72 = sadd.s32 %s71, 1
      %p75 = scmp.eq.s32.totalorder %s16, 1
      %p76 = scmp.ne.s32.totalorder %s71, %s73
      %p77 = scmp.eq.s32.totalorder %s16, 0
      %p78 = por %p76, %p77
      %p79 = scmp.ne.s32.totalorder %s71, %s73
      %p80 = scmp.eq.s32.totalorder %s21, 1
      %p81 = por %p79, %p80
      %p82 = scmp.ne.s32.totalorder %s73, %s74
      %p83 = scmp.eq.s32.totalorder %s21, 0
      %p84 = por %p82, %p83
      %p85 = scmp.ne.s32.totalorder %s73, %s74
      %p86 = scmp.eq.s32.totalorder %s22, 1
      %p87 = por %p85, %p86
      %p89 = scmp.ne.s32.totalorder %s74, %s88
      %p90 = scmp.eq.s32.totalorder %s22, 0
      %p91 = por %p89, %p90
      %s93 = sadd.s32 %s92, 1
      %p96 = scmp.eq.s32.totalorder %s16, 1
      %p97 = scmp.ne.s32.totalorder %s92, %s94
      %p98 = scmp.eq.s32.totalorder %s16, 0
      %p99 = por %p97, %p98
      %p100 = scmp.ne.s32.totalorder %s92, %s94
      %p101 = scmp.eq.s32.totalorder %s21, 1
      %p102 = por %p100, %p101
      %p103 = scmp.ne.s32.totalorder %s94, %s95
      %p104 = scmp.eq.s32.totalorder %s21, 0
      %p105 = por %p103, %p104
      %p106 = scmp.ne.s32.totalorder %s94, %s95
      %p107 = scmp.eq.s32.totalorder %s22, 1
      %p108 = por %p106, %p107
      %p110 = scmp.ne.s32.totalorder %s95, %s109
      %p111 = scmp.eq.s32.totalorder %s22, 0
      %p112 = por %p110, %p111
      %s114 = sadd.s32 %s113, 1
      %p117 = scmp.eq.s32.totalorder %s16, 1
      %p118 = scmp.ne.s32.totalorder %s113, %s115
      %p119 = scmp.eq.s32.totalorder %s16, 0
      %p120 = por %p118, %p119
      %p121 = scmp.ne.s32.totalorder %s113, %s115
      %p122 = scmp.eq.s32.totalorder %s21, 1
      %p123 = por %p121, %p122
      %p124 = scmp.ne.s32.totalorder %s115, %s116
      %p125 = scmp.eq.s32.totalorder %s21, 0
      %p126 = por %p124, %p125
      %p127 = scmp.ne.s32.totalorder %s115, %s116
      %p128 = scmp.eq.s32.totalorder %s22, 1
      %p129 = por %p127, %p128
      %p131 = scmp.ne.s32.totalorder %s116, %s130
      %p132 = scmp.eq.s32.totalorder %s22, 0
      %p133 = por %p131, %p132
      %s134 = ssub.s32 %s16, %s23
      %p135 = scmp.eq.s32.totalorder %s134, 0
      %s137 = sadd.s32 %s136, 1
      %s138 = scalar_select %p135, %s136, %s137
      %p141 = pneg %p135
      %p142 = scmp.eq.s32.totalorder %s16, 1
      %p143 = por %p141, %p142
      %p144 = scmp.ne.s32.totalorder %s136, %s139
      %p145 = scmp.eq.s32.totalorder %s16, 0
      %p146 = por %p144, %p145
      %p147 = scmp.ne.s32.totalorder %s136, %s139
      %p148 = scmp.eq.s32.totalorder %s21, 1
      %p149 = por %p147, %p148
      %p150 = scmp.ne.s32.totalorder %s139, %s140
      %p151 = scmp.eq.s32.totalorder %s21, 0
      %p152 = por %p150, %p151
      %p153 = scmp.ne.s32.totalorder %s139, %s140
      %p154 = scmp.eq.s32.totalorder %s22, 1
      %p155 = por %p153, %p154
      %p157 = scmp.ne.s32.totalorder %s140, %s156
      %p158 = scmp.eq.s32.totalorder %s22, 0
      %p159 = por %p157, %p158
      %p160 = scmp.le.s32.totalorder 1, %s16
      %p161 = scmp.lt.s32.totalorder %s16, 3
      %p162 = pnand %p160, %p161
      %p163 = pneg %p162
      // Predicated region
      $region9: #{tpu_custom_call.1} parent=5 // pred_check
        _
      $region10: #{tpu_custom_call.1} parent=5 // pred_check_branch
        %165 = sbr.rel (%p162) target = $region12
      $region11: #{tpu_custom_call.1} parent=5 // pred_region
        %s166 = ssub.s32 %s16, 1
        // Predicated region
        $region13: #{tpu_custom_call.1} parent=11 // pred_check
          %p167 = pneg %p63
        $region14: #{tpu_custom_call.1} parent=11 // pred_check_branch
          %169 = sbr.rel (%p167) target = $region16
        $region15: #{tpu_custom_call.1} parent=11 // pred_region
          _
        $region16: #{tpu_custom_call.1} parent=11 // pred_fallthru
          _
        // Predicated region
        $region17: #{tpu_custom_call.1} parent=11 // pred_check
          %p170 = pneg %p84
        $region18: #{tpu_custom_call.1} parent=11 // pred_check_branch
          %172 = sbr.rel (%p170) target = $region20
        $region19: #{tpu_custom_call.1} parent=11 // pred_region
          _
        $region20: #{tpu_custom_call.1} parent=11 // pred_fallthru
          _
        // Predicated region
        $region21: #{tpu_custom_call.1} parent=11 // pred_check
          %p173 = pneg %p105
        $region22: #{tpu_custom_call.1} parent=11 // pred_check_branch
          %175 = sbr.rel (%p173) target = $region24
        $region23: #{tpu_custom_call.1} parent=11 // pred_region
          %s177 = ssub.s32 2048, 2048
          %178 = vsyncadd [#allocation3], %s177
          %s179 = sshll.u32 [#allocation2], 4
          %s180 = int_to_ptr.vmem [resolvable:$true] %s179
          %185 = dma.hbm_to_vmem [thread:$0]  %s3, 2048, %s180, [#allocation3], 128, 128, 8
        $region24: #{tpu_custom_call.1} parent=11 // pred_fallthru
          _
        // Predicated region
        $region25: #{tpu_custom_call.1} parent=11 // pred_check
          %p186 = pneg %p126
        $region26: #{tpu_custom_call.1} parent=11 // pred_check_branch
          %188 = sbr.rel (%p186) target = $region28
        $region27: #{tpu_custom_call.1} parent=11 // pred_region
          %s190 = ssub.s32 2048, 2048
          %191 = vsyncadd [#allocation6], %s190
          %s192 = sshll.u32 [#allocation5], 4
          %s193 = int_to_ptr.vmem [resolvable:$true] %s192
          %198 = dma.hbm_to_vmem [thread:$0]  %s4, 2048, %s193, [#allocation6], 128, 128, 8
        $region28: #{tpu_custom_call.1} parent=11 // pred_fallthru
          _
      $region12: #{tpu_custom_call.1} parent=5 // pred_fallthru
        _
      %p199 = scmp.lt.s32.totalorder %s16, 2
      // Predicated region
      $region29: #{tpu_custom_call.1} parent=5 // pred_check
        %p200 = pneg %p199
      $region30: #{tpu_custom_call.1} parent=5 // pred_check_branch
        %202 = sbr.rel (%p200) target = $region32
      $region31: #{tpu_custom_call.1} parent=5 // pred_region
        // Predicated region
        $region33: #{tpu_custom_call.1} parent=31 // pred_check
          %p203 = pneg %p36
        $region34: #{tpu_custom_call.1} parent=31 // pred_check_branch
          %205 = sbr.rel (%p203) target = $region36
        $region35: #{tpu_custom_call.1} parent=31 // pred_region
          %s206 = smul.u32 4, %s16
          %p207 = scmp.lt.s32.totalorder %s206, 7
          %s208 = scalar_select %p207, %s206, 7
          %s209 = smul.addr %s208, 8
          %s210 = scalar_lea.vmem %s0, %s209
          %s211 = smul.u32 4, %s16
        $region36: #{tpu_custom_call.1} parent=31 // pred_fallthru
          _
      $region32: #{tpu_custom_call.1} parent=5 // pred_fallthru
        _
      %p212 = scmp.le.s32.totalorder 1, %s16
      %p213 = scmp.lt.s32.totalorder %s16, 3
      %p214 = pnand %p212, %p213
      %p215 = pneg %p214
      // Predicated region
      $region37: #{tpu_custom_call.1} parent=5 // pred_check
        _
      $region38: #{tpu_custom_call.1} parent=5 // pred_check_branch
        %217 = sbr.rel (%p214) target = $region40
      $region39: #{tpu_custom_call.1} parent=5 // pred_region
        %s218 = ssub.s32 %s16, 1
        // Predicated region
        $region41: #{tpu_custom_call.1} parent=39 // pred_check
          %p219 = pneg %p105
        $region42: #{tpu_custom_call.1} parent=39 // pred_check_branch
          %221 = sbr.rel (%p219) target = $region44
        $region43: #{tpu_custom_call.1} parent=39 // pred_region
          %222 = dma.done [#allocation3], 2048
        $region44: #{tpu_custom_call.1} parent=39 // pred_fallthru
          _
        // Predicated region
        $region45: #{tpu_custom_call.1} parent=39 // pred_check
          %p223 = pneg %p126
        $region46: #{tpu_custom_call.1} parent=39 // pred_check_branch
          %225 = sbr.rel (%p223) target = $region48
        $region47: #{tpu_custom_call.1} parent=39 // pred_region
          %226 = dma.done [#allocation6], 2048
        $region48: #{tpu_custom_call.1} parent=39 // pred_fallthru
          _
        %s227 = smul.u32 4, %s21
        %p228 = scmp.lt.s32.totalorder %s227, 7
        %s229 = scalar_select %p228, %s227, 7
        %s230 = smul.addr %s229, 8
        %s231 = scalar_lea.vmem %s0, %s230
        %p232 = pneg %p42
        %p233 = pneg %p39
        %p234 = pneg %p63
        %p235 = pneg %p60
        %p236 = pneg %p84
        %p237 = pneg %p81
        %p238 = pneg %p105
        %p239 = pneg %p102
        %p240 = pneg %p126
        %p241 = pneg %p123
        %p242 = pneg %p152
        %p243 = pneg %p149
        %s244 = sand.u32 %s139, 1
        %s245 = scalar_lea.sflag [#allocation4], %s244
        %s246 = sand.u32 %s139, 1
        %s247 = smul.addr %s246, 32
        %s248 = scalar_lea.vmem [#allocation7], %s247
        %s249 = smul.u32 4, %s21
        %p250 = scmp.lt.s32.totalorder %s249, 7
        %s251 = scalar_select %p250, %s249, 7
        %s252 = smul.addr %s251, 8
        %s253 = scalar_lea.vmem %s0, %s252
        %s254 = smul.u32 4, %s21
        %s255 = smul.u32 4, %s21
        %v256 = vld [vmem:[%s253] sm:$0xff]
        %v257 = vld [vmem:[%s253 + $0x8] sm:$0xff]
        %v258 = vld [vmem:[%s253 + $0x10] sm:$0xff]
        %v259 = vld [vmem:[%s253 + $0x18] sm:$0xff]
        %v260 = vld [vmem:[%s1] sm:$0xff]
        %v261 = vld [vmem:[%s1 + $0x8] sm:$0xff]
        %v262 = vld [vmem:[%s1 + $0x10] sm:$0xff]
        %v263 = vld [vmem:[%s1 + $0x18] sm:$0xff]
        %v264 = vld [vmem:[%s2] sm:$0x1]
        %v266 = vlaneseq
        %v267 = vshrl.u32 %v266, 7
        %v268 = vsub.s32 0, %v267
        %v269 = vrot.slane %v264, %v268
        %vm271 = vcmask 261120
        %v273 = vsel %vm271, %v256, 0
        %v276 = vsel %vm271, %v257, 0
        %v279 = vsel %vm271, %v258, 0
        %v282 = vsel %vm271, %v259, 0
        %284 = vmatprep.subr.mxu0 0.0
        %285 = vmatpush1.msra.mxu0 0.0
        %286 = vmatprep.subr.mxu0 0.0
        %287 = vmatpush1.msra.mxu0 0.0
        %288 = vmatprep.subr.mxu0 0.0
        %289 = vmatpush1.msra.mxu0 0.0
        %290 = vmatprep.subr.mxu0 0.0
        %291 = vmatpush1.msra.mxu0 0.0
        %292 = vmatprep.subr.mxu0 0.0
        %293 = vmatpush1.msra.mxu0 0.0
        %294 = vmatprep.subr.mxu0 0.0
        %295 = vmatpush1.msra.mxu0 0.0
        %296 = vmatprep.subr.mxu0 0.0
        %297 = vmatpush1.msra.mxu0 0.0
        %298 = vmatprep.subr.mxu0 0.0
        %299 = vmatpush1.msra.mxu0 0.0
        %300 = vmatprep.subr.mxu0 0.0
        %301 = vmatpush1.msra.mxu0 0.0
        %302 = vmatprep.subr.mxu0 0.0
        %303 = vmatpush1.msra.mxu0 0.0
        %304 = vmatprep.subr.mxu0 0.0
        %305 = vmatpush1.msra.mxu0 0.0
        %306 = vmatprep.subr.mxu0 0.0
        %307 = vmatpush1.msra.mxu0 0.0
        %308 = vmatprep.subr.mxu0 0.0
        %309 = vmatpush1.msra.mxu0 %v263
        %310 = vmatprep.subr.mxu0 0.0
        %311 = vmatpush1.msra.mxu0 %v262
        %312 = vmatprep.subr.mxu0 0.0
        %313 = vmatpush1.msra.mxu0 %v261
        %314 = vmatprep.subr.mxu0 0.0
        %315 = vmatpush1.msra.mxu0 %v260
        %316 = vmatprep.subr.mxu0 0.0
        %317 = vmatpush2.msra.mxu0 0.0
        %318 = vmatprep.subr.mxu0 0.0
        %319 = vmatpush2.msra.mxu0 0.0
        %320 = vmatprep.subr.mxu0 0.0
        %321 = vmatpush2.msra.mxu0 0.0
        %322 = vmatprep.subr.mxu0 0.0
        %323 = vmatpush2.msra.mxu0 0.0
        %324 = vmatprep.subr.mxu0 0.0
        %325 = vmatpush2.msra.mxu0 0.0
        %326 = vmatprep.subr.mxu0 0.0
        %327 = vmatpush2.msra.mxu0 0.0
        %328 = vmatprep.subr.mxu0 0.0
        %329 = vmatpush2.msra.mxu0 0.0
        %330 = vmatprep.subr.mxu0 0.0
        %331 = vmatpush2.msra.mxu0 0.0
        %332 = vmatprep.subr.mxu0 0.0
        %333 = vmatpush2.msra.mxu0 0.0
        %334 = vmatprep.subr.mxu0 0.0
        %335 = vmatpush2.msra.mxu0 0.0
        %336 = vmatprep.subr.mxu0 0.0
        %337 = vmatpush2.msra.mxu0 0.0
        %338 = vmatprep.subr.mxu0 0.0
        %339 = vmatpush2.msra.mxu0 0.0
        %340 = vmatprep.subr.mxu0 0.0
        %341 = vmatpush2.msra.mxu0 0.0
        %342 = vmatprep.subr.mxu0 0.0
        %343 = vmatpush2.msra.mxu0 0.0
        %344 = vmatprep.subr.mxu0 0.0
        %345 = vmatpush2.msra.mxu0 0.0
        %346 = vmatprep.subr.mxu0 0.0
        %347 = vmatpush2.msra.mxu0 0.0
        %348 = vmatprep.mubr.f32.mxu0 0.0
        %349 = vmatmul.mubr.f32.gmra.mxu0 %v273
        %v350 = vpop.f32.mrf.mxu0
        %v351 = vadd.f32 %v269, %v350
        %v352 = vpop.f32.mrf.mxu0
        %353 = vmatprep.mubr.f32.mxu0 0.0
        %354 = vmatmul.mubr.f32.gmra.mxu0 %v276
        %v355 = vpop.f32.mrf.mxu0
        %v356 = vadd.f32 %v269, %v355
        %v357 = vpop.f32.mrf.mxu0
        %358 = vmatprep.mubr.f32.mxu0 0.0
        %359 = vmatmul.mubr.f32.gmra.mxu0 %v279
        %v360 = vpop.f32.mrf.mxu0
        %v361 = vadd.f32 %v269, %v360
        %v362 = vpop.f32.mrf.mxu0
        %363 = vmatprep.mubr.f32.mxu0 0.0
        %364 = vmatmul.mubr.f32.gmra.mxu0 %v282
        %v365 = vpop.f32.mrf.mxu0
        %v366 = vadd.f32 %v269, %v365
        %v367 = vpop.f32.mrf.mxu0
        %368 = vdwg.mxu0
        %v369 = vmax.f32 %v351, 0.0
        %v370 = vmax.f32 %v356, 0.0
        %v371 = vmax.f32 %v361, 0.0
        %v372 = vmax.f32 %v366, 0.0
        %v373 = vld [vmem:[#allocation2] sm:$0xff]
        %v374 = vld [vmem:[#allocation2 + $0x8] sm:$0xff]
        %v375 = vld [vmem:[#allocation2 + $0x10] sm:$0xff]
        %v376 = vld [vmem:[#allocation2 + $0x18] sm:$0xff]
        %v377 = vld [vmem:[#allocation2 + $0x20] sm:$0xff]
        %v378 = vld [vmem:[#allocation2 + $0x28] sm:$0xff]
        %v379 = vld [vmem:[#allocation2 + $0x30] sm:$0xff]
        %v380 = vld [vmem:[#allocation2 + $0x38] sm:$0xff]
        %v381 = vld [vmem:[#allocation2 + $0x40] sm:$0xff]
        %v382 = vld [vmem:[#allocation2 + $0x48] sm:$0xff]
        %v383 = vld [vmem:[#allocation2 + $0x50] sm:$0xff]
        %v384 = vld [vmem:[#allocation2 + $0x58] sm:$0xff]
        %v385 = vld [vmem:[#allocation2 + $0x60] sm:$0xff]
        %v386 = vld [vmem:[#allocation2 + $0x68] sm:$0xff]
        %v387 = vld [vmem:[#allocation2 + $0x70] sm:$0xff]
        %v388 = vld [vmem:[#allocation2 + $0x78] sm:$0xff]
        %389 = vmatprep.subr.mxu0 0.0
        %390 = vmatpush1.msra.mxu0 %v388
        %391 = vmatprep.subr.mxu0 0.0
        %392 = vmatpush1.msra.mxu0 %v387
        %393 = vmatprep.subr.mxu0 0.0
        %394 = vmatpush1.msra.mxu0 %v386
        %395 = vmatprep.subr.mxu0 0.0
        %396 = vmatpush1.msra.mxu0 %v385
        %397 = vmatprep.subr.mxu0 0.0
        %398 = vmatpush1.msra.mxu0 %v384
        %399 = vmatprep.subr.mxu0 0.0
        %400 = vmatpush1.msra.mxu0 %v383
        %401 = vmatprep.subr.mxu0 0.0
        %402 = vmatpush1.msra.mxu0 %v382
        %403 = vmatprep.subr.mxu0 0.0
        %404 = vmatpush1.msra.mxu0 %v381
        %405 = vmatprep.subr.mxu0 0.0
        %406 = vmatpush1.msra.mxu0 %v380
        %407 = vmatprep.subr.mxu0 0.0
        %408 = vmatpush1.msra.mxu0 %v379
        %409 = vmatprep.subr.mxu0 0.0
        %410 = vmatpush1.msra.mxu0 %v378
        %411 = vmatprep.subr.mxu0 0.0
        %412 = vmatpush1.msra.mxu0 %v377
        %413 = vmatprep.subr.mxu0 0.0
        %414 = vmatpush1.msra.mxu0 %v376
        %415 = vmatprep.subr.mxu0 0.0
        %416 = vmatpush1.msra.mxu0 %v375
        %417 = vmatprep.subr.mxu0 0.0
        %418 = vmatpush1.msra.mxu0 %v374
        %419 = vmatprep.subr.mxu0 0.0
        %420 = vmatpush1.msra.mxu0 %v373
        %421 = vmatprep.subr.mxu0 0.0
        %422 = vmatpush2.msra.mxu0 0.0
        %423 = vmatprep.subr.mxu0 0.0
        %424 = vmatpush2.msra.mxu0 0.0
        %425 = vmatprep.subr.mxu0 0.0
        %426 = vmatpush2.msra.mxu0 0.0
        %427 = vmatprep.subr.mxu0 0.0
        %428 = vmatpush2.msra.mxu0 0.0
        %429 = vmatprep.subr.mxu0 0.0
        %430 = vmatpush2.msra.mxu0 0.0
        %431 = vmatprep.subr.mxu0 0.0
        %432 = vmatpush2.msra.mxu0 0.0
        %433 = vmatprep.subr.mxu0 0.0
        %434 = vmatpush2.msra.mxu0 0.0
        %435 = vmatprep.subr.mxu0 0.0
        %436 = vmatpush2.msra.mxu0 0.0
        %437 = vmatprep.subr.mxu0 0.0
        %438 = vmatpush2.msra.mxu0 0.0
        %439 = vmatprep.subr.mxu0 0.0
        %440 = vmatpush2.msra.mxu0 0.0
        %441 = vmatprep.subr.mxu0 0.0
        %442 = vmatpush2.msra.mxu0 0.0
        %443 = vmatprep.subr.mxu0 0.0
        %444 = vmatpush2.msra.mxu0 0.0
        %445 = vmatprep.subr.mxu0 0.0
        %446 = vmatpush2.msra.mxu0 0.0
        %447 = vmatprep.subr.mxu0 0.0
        %448 = vmatpush2.msra.mxu0 0.0
        %449 = vmatprep.subr.mxu0 0.0
        %450 = vmatpush2.msra.mxu0 0.0
        %451 = vmatprep.subr.mxu0 0.0
        %452 = vmatpush2.msra.mxu0 0.0
        %453 = vmatprep.mubr.f32.mxu0 0.0
        %454 = vmatmul.mubr.f32.gmra.mxu0 %v369
        %v455 = vpop.f32.mrf.mxu0
        %v456 = vadd.f32 0.0, %v455
        %v457 = vpop.f32.mrf.mxu0
        %458 = vmatprep.mubr.f32.mxu0 0.0
        %459 = vmatmul.mubr.f32.gmra.mxu0 %v370
        %v460 = vpop.f32.mrf.mxu0
        %v461 = vadd.f32 0.0, %v460
        %v462 = vpop.f32.mrf.mxu0
        %463 = vmatprep.mubr.f32.mxu0 0.0
        %464 = vmatmul.mubr.f32.gmra.mxu0 %v371
        %v465 = vpop.f32.mrf.mxu0
        %v466 = vadd.f32 0.0, %v465
        %v467 = vpop.f32.mrf.mxu0
        %468 = vmatprep.mubr.f32.mxu0 0.0
        %469 = vmatmul.mubr.f32.gmra.mxu0 %v372
        %v470 = vpop.f32.mrf.mxu0
        %v471 = vadd.f32 0.0, %v470
        %v472 = vpop.f32.mrf.mxu0
        %473 = vdwg.mxu0
        %v474 = vmax.f32 %v456, 0.0
        %v475 = vmax.f32 %v461, 0.0
        %v476 = vmax.f32 %v466, 0.0
        %v477 = vmax.f32 %v471, 0.0
        %v478 = vld [vmem:[#allocation5] sm:$0xff]
        %v479 = vld [vmem:[#allocation5 + $0x8] sm:$0xff]
        %v480 = vld [vmem:[#allocation5 + $0x10] sm:$0xff]
        %v481 = vld [vmem:[#allocation5 + $0x18] sm:$0xff]
        %v482 = vld [vmem:[#allocation5 + $0x20] sm:$0xff]
        %v483 = vld [vmem:[#allocation5 + $0x28] sm:$0xff]
        %v484 = vld [vmem:[#allocation5 + $0x30] sm:$0xff]
        %v485 = vld [vmem:[#allocation5 + $0x38] sm:$0xff]
        %v486 = vld [vmem:[#allocation5 + $0x40] sm:$0xff]
        %v487 = vld [vmem:[#allocation5 + $0x48] sm:$0xff]
        %v488 = vld [vmem:[#allocation5 + $0x50] sm:$0xff]
        %v489 = vld [vmem:[#allocation5 + $0x58] sm:$0xff]
        %v490 = vld [vmem:[#allocation5 + $0x60] sm:$0xff]
        %v491 = vld [vmem:[#allocation5 + $0x68] sm:$0xff]
        %v492 = vld [vmem:[#allocation5 + $0x70] sm:$0xff]
        %v493 = vld [vmem:[#allocation5 + $0x78] sm:$0xff]
        %494 = vmatprep.subr.mxu0 0.0
        %495 = vmatpush1.msra.mxu0 %v493
        %496 = vmatprep.subr.mxu0 0.0
        %497 = vmatpush1.msra.mxu0 %v492
        %498 = vmatprep.subr.mxu0 0.0
        %499 = vmatpush1.msra.mxu0 %v491
        %500 = vmatprep.subr.mxu0 0.0
        %501 = vmatpush1.msra.mxu0 %v490
        %502 = vmatprep.subr.mxu0 0.0
        %503 = vmatpush1.msra.mxu0 %v489
        %504 = vmatprep.subr.mxu0 0.0
        %505 = vmatpush1.msra.mxu0 %v488
        %506 = vmatprep.subr.mxu0 0.0
        %507 = vmatpush1.msra.mxu0 %v487
        %508 = vmatprep.subr.mxu0 0.0
        %509 = vmatpush1.msra.mxu0 %v486
        %510 = vmatprep.subr.mxu0 0.0
        %511 = vmatpush1.msra.mxu0 %v485
        %512 = vmatprep.subr.mxu0 0.0
        %513 = vmatpush1.msra.mxu0 %v484
        %514 = vmatprep.subr.mxu0 0.0
        %515 = vmatpush1.msra.mxu0 %v483
        %516 = vmatprep.subr.mxu0 0.0
        %517 = vmatpush1.msra.mxu0 %v482
        %518 = vmatprep.subr.mxu0 0.0
        %519 = vmatpush1.msra.mxu0 %v481
        %520 = vmatprep.subr.mxu0 0.0
        %521 = vmatpush1.msra.mxu0 %v480
        %522 = vmatprep.subr.mxu0 0.0
        %523 = vmatpush1.msra.mxu0 %v479
        %524 = vmatprep.subr.mxu0 0.0
        %525 = vmatpush1.msra.mxu0 %v478
        %526 = vmatprep.subr.mxu0 0.0
        %527 = vmatpush2.msra.mxu0 0.0
        %528 = vmatprep.subr.mxu0 0.0
        %529 = vmatpush2.msra.mxu0 0.0
        %530 = vmatprep.subr.mxu0 0.0
        %531 = vmatpush2.msra.mxu0 0.0
        %532 = vmatprep.subr.mxu0 0.0
        %533 = vmatpush2.msra.mxu0 0.0
        %534 = vmatprep.subr.mxu0 0.0
        %535 = vmatpush2.msra.mxu0 0.0
        %536 = vmatprep.subr.mxu0 0.0
        %537 = vmatpush2.msra.mxu0 0.0
        %538 = vmatprep.subr.mxu0 0.0
        %539 = vmatpush2.msra.mxu0 0.0
        %540 = vmatprep.subr.mxu0 0.0
        %541 = vmatpush2.msra.mxu0 0.0
        %542 = vmatprep.subr.mxu0 0.0
        %543 = vmatpush2.msra.mxu0 0.0
        %544 = vmatprep.subr.mxu0 0.0
        %545 = vmatpush2.msra.mxu0 0.0
        %546 = vmatprep.subr.mxu0 0.0
        %547 = vmatpush2.msra.mxu0 0.0
        %548 = vmatprep.subr.mxu0 0.0
        %549 = vmatpush2.msra.mxu0 0.0
        %550 = vmatprep.subr.mxu0 0.0
        %551 = vmatpush2.msra.mxu0 0.0
        %552 = vmatprep.subr.mxu0 0.0
        %553 = vmatpush2.msra.mxu0 0.0
        %554 = vmatprep.subr.mxu0 0.0
        %555 = vmatpush2.msra.mxu0 0.0
        %556 = vmatprep.subr.mxu0 0.0
        %557 = vmatpush2.msra.mxu0 0.0
        %558 = vmatprep.mubr.f32.mxu0 0.0
        %559 = vmatmul.mubr.f32.gmra.mxu0 %v474
        %v560 = vpop.f32.mrf.mxu0
        %v561 = vadd.f32 0.0, %v560
        %v562 = vpop.f32.mrf.mxu0
        %563 = vmatprep.mubr.f32.mxu0 0.0
        %564 = vmatmul.mubr.f32.gmra.mxu0 %v475
        %v565 = vpop.f32.mrf.mxu0
        %v566 = vadd.f32 0.0, %v565
        %v567 = vpop.f32.mrf.mxu0
        %568 = vmatprep.mubr.f32.mxu0 0.0
        %569 = vmatmul.mubr.f32.gmra.mxu0 %v476
        %v570 = vpop.f32.mrf.mxu0
        %v571 = vadd.f32 0.0, %v570
        %v572 = vpop.f32.mrf.mxu0
        %573 = vmatprep.mubr.f32.mxu0 0.0
        %574 = vmatmul.mubr.f32.gmra.mxu0 %v477
        %v575 = vpop.f32.mrf.mxu0
        %v576 = vadd.f32 0.0, %v575
        %v577 = vpop.f32.mrf.mxu0
        %578 = vdwg.mxu0
        %579 = vst [vmem:[%s248] sm:$0xff] %v561
        %580 = vst [vmem:[%s248 + $0x8] sm:$0xff] %v566
        %581 = vst [vmem:[%s248 + $0x10] sm:$0xff] %v571
        %582 = vst [vmem:[%s248 + $0x18] sm:$0xff] %v576
        %s583 = sand.u32 %s139, 1
        %s584 = scalar_lea.sflag [#allocation4], %s583
        %s585 = sand.u32 %s139, 1
        %s586 = smul.addr %s585, 32
        %s587 = scalar_lea.vmem [#allocation7], %s586
        // Predicated region
        $region49: #{tpu_custom_call.1} parent=39 // pred_check
          %p588 = pneg %p149
        $region50: #{tpu_custom_call.1} parent=39 // pred_check_branch
          %590 = sbr.rel (%p588) target = $region52
        $region51: #{tpu_custom_call.1} parent=39 // pred_region
          %s591 = smul.u32 4, %s21
          %s593 = ssub.s32 512, 512
          %594 = vsyncadd %s584, %s593
          %s595 = smul.addr %s591, 128
          %s596 = scalar_lea.hbm %s5, %s595
          %s597 = sshll.u32 %s587, 4
          %s598 = int_to_ptr.vmem [resolvable:$true] %s597
          %603 = dma.vmem_to_hbm [thread:$0]  %s598, 512, %s596, %s584, 128, 128, 8
        $region52: #{tpu_custom_call.1} parent=39 // pred_fallthru
          _
      $region40: #{tpu_custom_call.1} parent=5 // pred_fallthru
        _
      %p604 = scmp.le.s32.totalorder 2, %s16
      // Predicated region
      $region53: #{tpu_custom_call.1} parent=5 // pred_check
        %p605 = pneg %p604
      $region54: #{tpu_custom_call.1} parent=5 // pred_check_branch
        %607 = sbr.rel (%p605) target = $region56
      $region55: #{tpu_custom_call.1} parent=5 // pred_region
        %s608 = ssub.s32 %s16, 2
        // Predicated region
        $region57: #{tpu_custom_call.1} parent=55 // pred_check
          %p609 = pneg %p155
        $region58: #{tpu_custom_call.1} parent=55 // pred_check_branch
          %611 = sbr.rel (%p609) target = $region60
        $region59: #{tpu_custom_call.1} parent=55 // pred_region
          %s612 = sand.u32 %s140, 1
          %s613 = scalar_lea.sflag [#allocation4], %s612
          %s614 = sand.u32 %s140, 1
          %s615 = smul.addr %s614, 32
          %s616 = scalar_lea.vmem [#allocation7], %s615
          %617 = dma.done %s613, 512
        $region60: #{tpu_custom_call.1} parent=55 // pred_fallthru
          _
      $region56: #{tpu_custom_call.1} parent=5 // pred_fallthru
        _
    $region6: #{tpu_custom_call.1} parent=1 // loop_footer
      %s20 = sadd.s32 1, %s16
    $region7: #{tpu_custom_call.1} parent=1 // loop_footer_branch
      %15 = sbr.rel target = $region3
    $region8: #{tpu_custom_call.1} parent=1 // loop_exit
      _
    %618 = vsyncpa [#allocation3], 1
    %s619 = scalar_lea.sflag [#allocation3], 1
    %620 = vsyncpa %s619, 1
    %621 = vsyncpa [#allocation6], 1
    %622 = vsyncpa [#allocation4], 1
    %s623 = scalar_lea.sflag [#allocation4], 1
    %624 = vsyncpa %s623, 1

</llo_original>
